<compile_context>
chip_gen: v7x
topology: tpu7x:2x2x1
jax: 0.10.0
libtpu: 0.0.40
codegen_flags: <defaults>
</compile_context>

<pallas_src>
import numpy as np
import jax
import jax.numpy as jnp
from jax import lax
from jax.experimental import pallas as pl
from jax.experimental.pallas import tpu as pltpu


# ---------------------------------------------------------------------------
# helpers
# ---------------------------------------------------------------------------

_VMEM_LIMIT = 48 * 1024 * 1024  # fits v7x's 64 MiB physical VMEM with headroom


def _round_up(x, m):
    return (x + m - 1) // m * m


def _pad2(a, rows, cols):
    pr, pc = rows - a.shape[0], cols - a.shape[1]
    if pr or pc:
        a = jnp.pad(a, ((0, pr), (0, pc)))
    return a


def _tile_sizes():
    """(tm, tn, tk) defaults per generation: 128-wide on v5e, 256 on v6e/v7x."""
    try:
        kind = jax.devices()[0].device_kind.lower()
    except Exception:  # pragma: no cover
        kind = ""
    if "v5" in kind:
        return 128, 128, 512
    return 256, 256, 512


# ---------------------------------------------------------------------------
# Tiled matmul (+ fused bias):  o = x @ w_t + b
# ---------------------------------------------------------------------------

def _matmul_bias_kernel(x_ref, w_ref, b_ref, o_ref, acc_ref):
    k = pl.program_id(2)

    @pl.when(k == 0)
    def _():
        acc_ref[...] = jnp.zeros_like(acc_ref)

    acc_ref[...] += jnp.dot(x_ref[...], w_ref[...],
                            preferred_element_type=jnp.float32)

    @pl.when(k == pl.num_programs(2) - 1)
    def _():
        o_ref[...] = (acc_ref[...] + b_ref[...]).astype(o_ref.dtype)


def pallas_matmul_bias(x, w_t, bias=None):
    """o = x @ w_t + bias.   x:[M,K]  w_t:[K,N] (K-major)  bias:[N] or None."""
    M, Kd = x.shape
    Kd2, N = w_t.shape
    assert Kd == Kd2
    TM, TN, TK = _tile_sizes()
    tm = min(TM, _round_up(M, 8))
    tn = min(TN, _round_up(N, 128))
    tk = min(TK, _round_up(Kd, 128))
    Mp, Np, Kp = _round_up(M, tm), _round_up(N, tn), _round_up(Kd, tk)

    xp = _pad2(x.astype(jnp.bfloat16), Mp, Kp)          # bf16 MXU datapath
    wp = _pad2(w_t.astype(jnp.bfloat16), Kp, Np)
    if bias is None:
        bias = jnp.zeros((N,), jnp.float32)
    bp = _pad2(bias.reshape(1, N).astype(jnp.float32), 1, Np)

    out = pl.pallas_call(
        _matmul_bias_kernel,
        out_shape=jax.ShapeDtypeStruct((Mp, Np), jnp.float32),
        grid_spec=pltpu.PrefetchScalarGridSpec(
            num_scalar_prefetch=0,
            grid=(Mp // tm, Np // tn, Kp // tk),
            in_specs=[pl.BlockSpec((tm, tk), lambda i, j, k: (i, k)),
                      pl.BlockSpec((tk, tn), lambda i, j, k: (k, j)),
                      pl.BlockSpec((1, tn), lambda i, j, k: (0, j))],
            out_specs=pl.BlockSpec((tm, tn), lambda i, j, k: (i, j)),
            scratch_shapes=[pltpu.VMEM((tm, tn), jnp.float32)]),
        compiler_params=pltpu.CompilerParams(
            dimension_semantics=("parallel", "parallel", "arbitrary"),
            vmem_limit_bytes=_VMEM_LIMIT),
    )(xp, wp, bp)
    return out[:M, :N]


# ---------------------------------------------------------------------------
# Fused LSH projection + in-kernel bit pack:  codes[m, l] = sum_k (rows@rp > 0)*2^k
# ---------------------------------------------------------------------------

def _codes_kernel(rows_ref, rp_ref, pack_ref, codes_ref, acc_ref):
    k = pl.program_id(1)

    @pl.when(k == 0)
    def _():
        acc_ref[...] = jnp.zeros_like(acc_ref)

    acc_ref[...] += jnp.dot(rows_ref[...], rp_ref[...],
                            preferred_element_type=jnp.float32)

    @pl.when(k == pl.num_programs(1) - 1)
    def _():
        bits = (acc_ref[...] > 0).astype(jnp.float32)            # [tm, K*L]
        codes = jnp.dot(bits, pack_ref[...],
                        preferred_element_type=jnp.float32)      # [tm, L]
        codes_ref[...] = codes.astype(jnp.int32)


def pallas_lsh_codes(rows, rp, pack):
    """rows:[M,D+1] @ rp:[D+1,K*L] -> per-table int32 codes [M, L] (packed in-kernel)."""
    M, Kd = rows.shape
    Kd2, KL = rp.shape
    KL2, L = pack.shape
    assert Kd == Kd2 and KL == KL2
    TM, _, TK = _tile_sizes()
    tm = min(TM, _round_up(M, 8))
    tk = min(TK, _round_up(Kd, 128))
    Mp, Kp = _round_up(M, tm), _round_up(Kd, tk)

    rowsp = _pad2(rows.astype(jnp.bfloat16), Mp, Kp)
    rpp = _pad2(rp.astype(jnp.bfloat16), Kp, KL)

    out = pl.pallas_call(
        _codes_kernel,
        out_shape=jax.ShapeDtypeStruct((Mp, L), jnp.int32),
        grid_spec=pltpu.PrefetchScalarGridSpec(
            num_scalar_prefetch=0,
            grid=(Mp // tm, Kp // tk),
            in_specs=[pl.BlockSpec((tm, tk), lambda i, k: (i, k)),
                      pl.BlockSpec((tk, KL), lambda i, k: (k, 0)),
                      pl.BlockSpec((KL, L), lambda i, k: (0, 0))],
            out_specs=pl.BlockSpec((tm, L), lambda i, k: (i, 0)),
            scratch_shapes=[pltpu.VMEM((tm, KL), jnp.float32)]),
        compiler_params=pltpu.CompilerParams(
            dimension_semantics=("parallel", "arbitrary"),
            vmem_limit_bytes=_VMEM_LIMIT),
    )(rowsp, rpp, pack.astype(jnp.float32))
    return out[:M]


# ---------------------------------------------------------------------------
# Fused triplet loss: projections + cosine-similarity hinge in one kernel
# ---------------------------------------------------------------------------

def _make_triplet_kernel(alpha):
    alpha = float(alpha)

    def _triplet_kernel(m_ref, px_ref, pw_ref, nx_ref, nw_ref, rp_ref,
                        o_ref, acc_ref):
        i = pl.program_id(0)

        @pl.when(i == 0)
        def _():
            acc_ref[...] = jnp.zeros_like(acc_ref)

        rp = rp_ref[...]
        pxp = jnp.dot(px_ref[...], rp, preferred_element_type=jnp.float32)
        pwp = jnp.dot(pw_ref[...], rp, preferred_element_type=jnp.float32)
        nxp = jnp.dot(nx_ref[...], rp, preferred_element_type=jnp.float32)
        nwp = jnp.dot(nw_ref[...], rp, preferred_element_type=jnp.float32)

        eps2 = jnp.float32(1e-12)  # cosine_similarity eps = 1e-6 on the norm product
        dot_p = jnp.sum(pxp * pwp, axis=-1, keepdims=True)
        den_p = (jnp.sum(pxp * pxp, axis=-1, keepdims=True) *
                 jnp.sum(pwp * pwp, axis=-1, keepdims=True))
        sim_p = dot_p * lax.rsqrt(jnp.maximum(den_p, eps2))
        dot_n = jnp.sum(nxp * nwp, axis=-1, keepdims=True)
        den_n = (jnp.sum(nxp * nxp, axis=-1, keepdims=True) *
                 jnp.sum(nwp * nwp, axis=-1, keepdims=True))
        sim_n = dot_n * lax.rsqrt(jnp.maximum(den_n, eps2))

        hinge = jnp.maximum(sim_n - sim_p + alpha, 0.0)          # [tm, 1]

        tm = hinge.shape[0]
        row = i * tm + lax.broadcasted_iota(jnp.int32, (tm, 1), 0)
        m = m_ref[0]
        hinge = jnp.where(row < m, hinge, 0.0)
        acc_ref[...] = acc_ref[...] + jnp.sum(hinge, keepdims=True)

        @pl.when(i == pl.num_programs(0) - 1)
        def _():
            m_f = jnp.maximum(m, 1).astype(jnp.float32)
            o_ref[...] = acc_ref[...] / m_f

    return _triplet_kernel


def pallas_triplet_loss(p_x, p_w, n_x, n_w, rp, m, alpha=1.0):
    Mrows, Dp1 = p_x.shape
    KL = rp.shape[1]
    tm = 128
    Mp = _round_up(max(Mrows, 1), tm)

    def prep(a):
        return _pad2(a.astype(jnp.bfloat16), Mp, Dp1)

    pxp, pwp, nxp, nwp = prep(p_x), prep(p_w), prep(n_x), prep(n_w)
    rpb = rp.astype(jnp.bfloat16)
    m_arr = jnp.asarray([m], dtype=jnp.int32)

    out = pl.pallas_call(
        _make_triplet_kernel(alpha),
        out_shape=jax.ShapeDtypeStruct((1, 1), jnp.float32),
        grid_spec=pltpu.PrefetchScalarGridSpec(
            num_scalar_prefetch=1,
            grid=(Mp // tm,),
            in_specs=[pl.BlockSpec((tm, Dp1), lambda i, m_sm: (i, 0))] * 4
                     + [pl.BlockSpec((Dp1, KL), lambda i, m_sm: (0, 0))],
            out_specs=pl.BlockSpec((1, 1), lambda i, m_sm: (0, 0)),
            scratch_shapes=[pltpu.VMEM((1, 1), jnp.float32)]),
        compiler_params=pltpu.CompilerParams(
            dimension_semantics=("arbitrary",),
            vmem_limit_bytes=_VMEM_LIMIT),
    )(m_arr, pxp, pwp, nxp, nwp, rpb)
    return out[0, 0]


# ---------------------------------------------------------------------------
# LSHSampledLayer (forward only)
# ---------------------------------------------------------------------------

class LSHSampledLayerPallas:
    """JAX/Pallas reimplementation of the PyTorch LSHSampledLayer forward."""

    def __init__(self, layer_size, K, L, num_class, seed=0):
        self.D = layer_size
        self.K = K
        self.L = L
        self.num_class = num_class
        self.alpha = 1.0
        key = jax.random.PRNGKey(seed)
        kw, kr = jax.random.split(key, 2)
        initrange = 0.05
        # params.weight ~ U(-0.05, 0.05); params.bias filled with 0 (shape [C, 1])
        self.weight = jax.random.uniform(
            kw, (num_class, layer_size), jnp.float32, -initrange, initrange)
        self.weight_t = jnp.asarray(self.weight.T)            # [D, C], K-major for MXU
        self.bias = jnp.zeros((num_class, 1), jnp.float32)
        # SimHash(D+1, K, L) random projection
        self.rp = jax.random.normal(kr, (layer_size + 1, K * L), jnp.float32)
        # bit-weight matrix used for in-kernel code packing: pack[l*K+k, l] = 2^k
        pack = np.zeros((K * L, L), np.float32)
        for l in range(L):
            for k in range(K):
                pack[l * K + k, l] = float(2 ** k)
        self.pack = jnp.asarray(pack)
        # fresh permutation each forward (matches torch.randperm semantics)
        self._rng = np.random.default_rng(seed)

    def forward(self, x):
        N, D = x.shape
        C, K, L = self.num_class, self.K, self.L

        ones = jnp.ones((N, 1), jnp.float32)
        query = jnp.concatenate([x.astype(jnp.float32), ones], axis=1)     # [N, D+1]
        Wb = jnp.concatenate([self.weight, self.bias], axis=1)             # [C, D+1]

        # --- fused LSH hashing: one projection+pack kernel for queries AND weights
        rows = jnp.concatenate([query, Wb], axis=0)                        # [N+C, D+1]
        codes = pallas_lsh_codes(rows, self.rp, self.pack)                 # [N+C, L]
        codes_q, codes_w = codes[:N], codes[N:]

        # retrieved[n, c]: query n and class c share a bucket in any table.
        # Per-table equality, OR-reduced, without the [N, C, L] intermediate.
        retrieved = codes_q[:, 0][:, None] == codes_w[:, 0][None, :]
        for l in range(1, L):
            retrieved = retrieved | (codes_q[:, l][:, None] == codes_w[:, l][None, :])

        # --- full product (tiled bf16 MXU matmul) + device-side thresholds
        product = pallas_matmul_bias(x, self.weight_t)                     # [N, C]
        t1, t2 = 0.001, 0.5
        t1_th = int(C * (1 - t1))
        t2_th = int(C * (1 - t2))
        # kth-smallest per row via top_k (no full sort, no host .item() sync)
        t1_vals = lax.top_k(product, C - t1_th + 1)[0][:, -1]
        t2_vals = lax.top_k(product, C - t2_th + 1)[0][:, -1]
        t1_ip = jnp.maximum(jnp.mean(t1_vals), 0.0)
        t2_ip = jnp.mean(t2_vals)

        positive_mask = (product > t1_ip) & (~retrieved)
        negative_mask = (product < t2_ip) & retrieved

        # single host sync for everything with data-dependent shape
        hit_np, pos_np, neg_np = jax.device_get(
            (jnp.any(retrieved, axis=0), positive_mask, negative_mask))

        sample_ids_np = np.where(hit_np)[0].astype(np.int32)
        if sample_ids_np.size == 0:
            best = int(jnp.argmax(Wb @ jnp.sum(query, axis=0)))
            sample_ids_np = np.array([best], dtype=np.int32)
        sample_ids = jnp.asarray(sample_ids_np)

        # --- sampled logits: x @ W_t[:, ids] + b[ids]  (fused bias, lane-dense S)
        sample_weights_t = jnp.take(self.weight_t, sample_ids, axis=1)     # [D, S]
        sample_bias = jnp.take(self.bias[:, 0], sample_ids)                # [S]
        sample_logits = pallas_matmul_bias(x, sample_weights_t, sample_bias)

        # --- triplet loss on balanced positive/negative pairs
        p_row, p_col = np.where(pos_np)
        n_row, n_col = np.where(neg_np)
        num_positive, num_negative = int(p_row.size), int(n_row.size)
        m = min(num_positive, num_negative)

        if m == 0:
            triplet_loss = jnp.zeros((), jnp.float32)   # nan_to_num(mean(empty)) == 0
        else:
            if num_positive < num_negative:
                sel = self._rng.permutation(num_negative)[:num_positive]
                n_row, n_col = n_row[sel], n_col[sel]
            else:
                sel = self._rng.permutation(num_positive)[:num_negative]
                p_row, p_col = p_row[sel], p_col[sel]
            p_x, p_w = query[p_row], Wb[p_col]
            n_x, n_w = query[n_row], Wb[n_col]
            triplet_loss = pallas_triplet_loss(
                p_x, p_w, n_x, n_w, self.rp, m, alpha=self.alpha)

        # TODO(synk): stateful LSH bucket maintenance (query_remove / insert_removed /
        # rebuild / reset_lsh) only mutates the hash tables for *future* calls and has
        # no effect on this forward's outputs; it is not modeled here.
        return sample_logits, sample_ids, triplet_loss


# ---------------------------------------------------------------------------
# Demo
# ---------------------------------------------------------------------------

if __name__ == "__main__":
    N, D, C, K, L = 8, 32, 64, 4, 3
    layer = LSHSampledLayerPallas(layer_size=D, K=K, L=L, num_class=C, seed=0)

    x = jax.random.normal(jax.random.PRNGKey(0), (N, D), jnp.float32)

    sample_logits, sample_ids, triplet_loss = layer.forward(x)
    jax.block_until_ready((sample_logits, sample_ids, triplet_loss))

    assert sample_logits.shape == (N, sample_ids.shape[0])
    assert bool(jnp.isfinite(triplet_loss))
    print("KERNEL_OK")
</pallas_src>

<mosaic_0001>
module attributes {stable_mosaic.version = 11 : i64} {
  func.func @_codes_kernel(%arg0: i32, %arg1: i32, %arg2: memref<72x128xbf16, #tpu.memory_space<vmem>>, %arg3: memref<128x12xbf16, #tpu.memory_space<vmem>>, %arg4: memref<12x3xf32, #tpu.memory_space<vmem>>, %arg5: memref<72x3xi32, #tpu.memory_space<vmem>>, %arg6: memref<72x12xf32, #tpu.memory_space<vmem>>) attributes {dimension_semantics = [#tpu.dimension_semantics<parallel>, #tpu.dimension_semantics<arbitrary>], iteration_bounds = array<i64: 1, 1>, scalar_prefetch = 0 : i64, scratch_operands = 1 : i64, tpu.core_type = #tpu.core_type<tc>, window_params = [{transform_indices = @transform_0, window_bounds = array<i64: 72, 128>}, {transform_indices = @transform_1, window_bounds = array<i64: 128, 12>}, {pipeline_mode = #tpu.pipeline_mode<synchronous>, transform_indices = @transform_2, window_bounds = array<i64: 12, 3>}, {transform_indices = @transform_3, window_bounds = array<i64: 72, 3>}]} {
    %c0_i32 = arith.constant 0 : i32
    %0 = arith.cmpi eq, %arg1, %c0_i32 : i32
    %1 = arith.extui %0 : i1 to i32
    %c0_i32_0 = arith.constant 0 : i32
    %2 = arith.cmpi ne, %1, %c0_i32_0 : i32
    scf.if %2 {
      %cst_10 = arith.constant 0.000000e+00 : f32
      %12 = vector.broadcast %cst_10 : f32 to vector<72x12xf32>
      %c0_11 = arith.constant 0 : index
      %c0_12 = arith.constant 0 : index
      %13 = vector.load %arg6[%c0_11, %c0_12] : memref<72x12xf32, #tpu.memory_space<vmem>>, vector<72x12xf32>
      tpu.vector_store %arg6[%c0_11, %c0_12], %12 {strides = array<i32>} : memref<72x12xf32, #tpu.memory_space<vmem>>, vector<72x12xf32>,
    } else {
    }
    %c0 = arith.constant 0 : index
    %c0_1 = arith.constant 0 : index
    %3 = vector.load %arg6[%c0, %c0_1] : memref<72x12xf32, #tpu.memory_space<vmem>>, vector<72x12xf32>
    %c0_2 = arith.constant 0 : index
    %c0_3 = arith.constant 0 : index
    %4 = vector.load %arg2[%c0_2, %c0_3] : memref<72x128xbf16, #tpu.memory_space<vmem>>, vector<72x128xbf16>
    %c0_4 = arith.constant 0 : index
    %c0_5 = arith.constant 0 : index
    %5 = vector.load %arg3[%c0_4, %c0_5] : memref<128x12xbf16, #tpu.memory_space<vmem>>, vector<128x12xbf16>
    %cst = arith.constant dense<0.000000e+00> : vector<72x12xf32>
    %6 = tpu.matmul %4, %5, %cst {dimension_numbers = #tpu.dot_dimension_numbers<[1], [0], [0], [1], [0, 0, 1, 1], [], []>} : vector<72x128xbf16>, vector<128x12xbf16>, vector<72x12xf32> -> vector<72x12xf32>
    %7 = arith.addf %3, %6 : vector<72x12xf32>
    %c0_6 = arith.constant 0 : index
    %c0_7 = arith.constant 0 : index
    %8 = vector.load %arg6[%c0_6, %c0_7] : memref<72x12xf32, #tpu.memory_space<vmem>>, vector<72x12xf32>
    tpu.vector_store %arg6[%c0_6, %c0_7], %7 {strides = array<i32>} : memref<72x12xf32, #tpu.memory_space<vmem>>, vector<72x12xf32>,
    %c0_i32_8 = arith.constant 0 : i32
    %9 = arith.cmpi eq, %arg1, %c0_i32_8 : i32
    %10 = arith.extui %9 : i1 to i32
    %c0_i32_9 = arith.constant 0 : i32
    %11 = arith.cmpi ne, %10, %c0_i32_9 : i32
    scf.if %11 {
      %c0_10 = arith.constant 0 : index
      %c0_11 = arith.constant 0 : index
      %12 = vector.load %arg6[%c0_10, %c0_11] : memref<72x12xf32, #tpu.memory_space<vmem>>, vector<72x12xf32>
      %cst_12 = arith.constant 0.000000e+00 : f32
      %13 = vector.broadcast %cst_12 : f32 to vector<72x12xf32>
      %14 = arith.cmpf ogt, %12, %13 : vector<72x12xf32>
      %15 = arith.extui %14 : vector<72x12xi1> to vector<72x12xi32>
      %16 = arith.sitofp %15 : vector<72x12xi32> to vector<72x12xf32>
      %c0_13 = arith.constant 0 : index
      %c0_14 = arith.constant 0 : index
      %17 = vector.load %arg4[%c0_13, %c0_14] : memref<12x3xf32, #tpu.memory_space<vmem>>, vector<12x3xf32>
      %cst_15 = arith.constant dense<0.000000e+00> : vector<72x3xf32>
      %18 = tpu.matmul %16, %17, %cst_15 {dimension_numbers = #tpu.dot_dimension_numbers<[1], [0], [0], [1], [0, 0, 1, 1], [], []>} : vector<72x12xf32>, vector<12x3xf32>, vector<72x3xf32> -> vector<72x3xf32>
      %19 = arith.fptosi %18 : vector<72x3xf32> to vector<72x3xi32>
      %c0_16 = arith.constant 0 : index
      %c0_17 = arith.constant 0 : index
      %20 = vector.load %arg5[%c0_16, %c0_17] : memref<72x3xi32, #tpu.memory_space<vmem>>, vector<72x3xi32>
      tpu.vector_store %arg5[%c0_16, %c0_17], %19 {strides = array<i32>} : memref<72x3xi32, #tpu.memory_space<vmem>>, vector<72x3xi32>,
    } else {
    }
    return
  }
  func.func @transform_0(%arg0: i32, %arg1: i32) -> (i32, i32) {
    %c0_i32 = arith.constant 0 : i32
    return %arg0, %arg1 : i32, i32
  }
  func.func @transform_1(%arg0: i32, %arg1: i32) -> (i32, i32) {
    %c0_i32 = arith.constant 0 : i32
    %c0_i32_0 = arith.constant 0 : i32
    return %arg1, %c0_i32 : i32, i32
  }
  func.func @transform_2(%arg0: i32, %arg1: i32) -> (i32, i32) {
    %c0_i32 = arith.constant 0 : i32
    %c0_i32_0 = arith.constant 0 : i32
    %c0_i32_1 = arith.constant 0 : i32
    return %c0_i32, %c0_i32_0 : i32, i32
  }
  func.func @transform_3(%arg0: i32, %arg1: i32) -> (i32, i32) {
    %c0_i32 = arith.constant 0 : i32
    %c0_i32_0 = arith.constant 0 : i32
    return %arg0, %c0_i32 : i32, i32
  }
}

</mosaic_0001>

<llo_original>
// kernel: tpu_custom_call.1
$region0: #{tpu_custom_call.1}
  #allocation0 [shape = 'u32[]', space=smem, size = 0x4, offset = 0x4, fixed_abs, tag = 'smem constant byte address 0x4 - core index']
  #allocation1 [shape = 'u32[144,128]{1,0:T(1,128)}', space=vmem, size = 0x12000, scoped, tag = 'internal scratch']
  #allocation2 [shape = 'f32[72,12]{1,0:T(8,128)}', space=vmem, size = 0x9000, scoped, tag = 'scratch operand']
  %s0 = inlined_call_operand.vmem [shape: bf16[72,128], index: 0, kind: input, shape index: {}]
  %s1 = inlined_call_operand.vmem [shape: bf16[128,12], index: 1, kind: input, shape index: {}]
  %s2 = inlined_call_operand.vmem [shape: f32[12,3], index: 2, kind: input, shape index: {}]
  %s3 = inlined_call_operand.vmem [shape: s32[72,3], index: 3, kind: output, shape index: {}]
  %s4 = sld [smem:[#allocation0]]
  $region30: #{tpu_custom_call.1} parent=0
    _
  %s6 = ssub.s32 1, %s4
  %s7 = scalar_select 0, %s6, %s4
  // Predicated region
  $region2: #{tpu_custom_call.1} parent=0 // pred_check
    _
  $region3: #{tpu_custom_call.1} parent=0 // pred_check_branch
    %9 = sbr.rel (0) target = $region5
  $region4: #{tpu_custom_call.1} parent=0 // pred_region
    _
  $region5: #{tpu_custom_call.1} parent=0 // pred_fallthru
    _
  // Predicated region
  $region6: #{tpu_custom_call.1} parent=0 // pred_check
    _
  $region7: #{tpu_custom_call.1} parent=0 // pred_check_branch
    %11 = sbr.rel (0) target = $region9
  $region8: #{tpu_custom_call.1} parent=0 // pred_region
    _
  $region9: #{tpu_custom_call.1} parent=0 // pred_fallthru
    _
  // Predicated region
  $region10: #{tpu_custom_call.1} parent=0 // pred_check
    _
  $region11: #{tpu_custom_call.1} parent=0 // pred_check_branch
    %13 = sbr.rel (0) target = $region13
  $region12: #{tpu_custom_call.1} parent=0 // pred_region
    _
  $region13: #{tpu_custom_call.1} parent=0 // pred_fallthru
    _
  %p15 = scmp.eq.s32.totalorder 0, 0
  // Predicated region
  $region14: #{tpu_custom_call.1} parent=0 // pred_check
    %p16 = pneg %p15
  $region15: #{tpu_custom_call.1} parent=0 // pred_check_branch
    %18 = sbr.rel (%p16) target = $region17
  $region16: #{tpu_custom_call.1} parent=0 // pred_region
    %vm19 = vcmask 97280
    %20 = vst.msk [vmem:[#allocation2] sm:$0xff] %vm19, 0.0
    %21 = vst.msk [vmem:[#allocation2 + $0x8] sm:$0xff] %vm19, 0.0
    %22 = vst.msk [vmem:[#allocation2 + $0x10] sm:$0xff] %vm19, 0.0
    %23 = vst.msk [vmem:[#allocation2 + $0x18] sm:$0xff] %vm19, 0.0
    %24 = vst.msk [vmem:[#allocation2 + $0x20] sm:$0xff] %vm19, 0.0
    %25 = vst.msk [vmem:[#allocation2 + $0x28] sm:$0xff] %vm19, 0.0
    %26 = vst.msk [vmem:[#allocation2 + $0x30] sm:$0xff] %vm19, 0.0
    %27 = vst.msk [vmem:[#allocation2 + $0x38] sm:$0xff] %vm19, 0.0
    %28 = vst.msk [vmem:[#allocation2 + $0x40] sm:$0xff] %vm19, 0.0
  $region17: #{tpu_custom_call.1} parent=0 // pred_fallthru
    _
  %v29 = vld [vmem:[#allocation2] sm:$0xff]
  %v30 = vld [vmem:[#allocation2 + $0x8] sm:$0xff]
  %v31 = vld [vmem:[#allocation2 + $0x10] sm:$0xff]
  %v32 = vld [vmem:[#allocation2 + $0x18] sm:$0xff]
  %v33 = vld [vmem:[#allocation2 + $0x20] sm:$0xff]
  %v34 = vld [vmem:[#allocation2 + $0x28] sm:$0xff]
  %v35 = vld [vmem:[#allocation2 + $0x30] sm:$0xff]
  %v36 = vld [vmem:[#allocation2 + $0x38] sm:$0xff]
  %v37 = vld [vmem:[#allocation2 + $0x40] sm:$0xff]
  %v38 = vld [vmem:[%s0] sm:$0xf]
  %v39 = vld [vmem:[%s0 + $0x4] sm:$0xf]
  %v40 = vld [vmem:[%s0 + $0x8] sm:$0xf]
  %v41 = vld [vmem:[%s0 + $0xc] sm:$0xf]
  %v42 = vld [vmem:[%s0 + $0x10] sm:$0xf]
  %v43 = vld [vmem:[%s0 + $0x14] sm:$0xf]
  %v44 = vld [vmem:[%s0 + $0x18] sm:$0xf]
  %v45 = vld [vmem:[%s0 + $0x1c] sm:$0xf]
  %v46 = vld [vmem:[%s0 + $0x20] sm:$0xf]
  %v47 = vld [vmem:[%s1] sm:$0xf]
  %v48 = vld [vmem:[%s1 + $0x4] sm:$0xf]
  %v49 = vld [vmem:[%s1 + $0x8] sm:$0xf]
  %v50 = vld [vmem:[%s1 + $0xc] sm:$0xf]
  %v51 = vld [vmem:[%s1 + $0x10] sm:$0xf]
  %v52 = vld [vmem:[%s1 + $0x14] sm:$0xf]
  %v53 = vld [vmem:[%s1 + $0x18] sm:$0xf]
  %v54 = vld [vmem:[%s1 + $0x1c] sm:$0xf]
  %v55 = vld [vmem:[%s1 + $0x20] sm:$0xf]
  %v56 = vld [vmem:[%s1 + $0x24] sm:$0xf]
  %v57 = vld [vmem:[%s1 + $0x28] sm:$0xf]
  %v58 = vld [vmem:[%s1 + $0x2c] sm:$0xf]
  %v59 = vld [vmem:[%s1 + $0x30] sm:$0xf]
  %v60 = vld [vmem:[%s1 + $0x34] sm:$0xf]
  %v61 = vld [vmem:[%s1 + $0x38] sm:$0xf]
  %v62 = vld [vmem:[%s1 + $0x3c] sm:$0xf]
  %v72 = vunpack.c.l.b16 %v38
  %v73 = vunpack.c.l.b16 %v39
  %v74 = vunpack.c.l.b16 %v40
  %v75 = vunpack.c.l.b16 %v41
  %v76 = vunpack.c.l.b16 %v42
  %v77 = vunpack.c.l.b16 %v43
  %v78 = vunpack.c.l.b16 %v44
  %v79 = vunpack.c.l.b16 %v45
  %v80 = vunpack.c.l.b16 %v46
  %v81 = vpack.c.b16 %v73, %v72
  %v82 = vpack.c.b16 %v75, %v74
  %v83 = vpack.c.b16 %v77, %v76
  %v84 = vpack.c.b16 %v79, %v78
  %v85 = vpack.c.b16 %v80, %v80
  %v107 = vunpack.c.l.b16 %v47
  %v108 = vunpack.c.l.b16 %v48
  %v109 = vunpack.c.l.b16 %v49
  %v110 = vunpack.c.l.b16 %v50
  %v111 = vunpack.c.l.b16 %v51
  %v112 = vunpack.c.l.b16 %v52
  %v113 = vunpack.c.l.b16 %v53
  %v114 = vunpack.c.l.b16 %v54
  %v115 = vunpack.c.l.b16 %v55
  %v116 = vunpack.c.l.b16 %v56
  %v117 = vunpack.c.l.b16 %v57
  %v118 = vunpack.c.l.b16 %v58
  %v119 = vunpack.c.l.b16 %v59
  %v120 = vunpack.c.l.b16 %v60
  %v121 = vunpack.c.l.b16 %v61
  %v122 = vunpack.c.l.b16 %v62
  %v123 = vpack.c.b16 %v108, %v107
  %v124 = vpack.c.b16 %v110, %v109
  %v125 = vpack.c.b16 %v112, %v111
  %v126 = vpack.c.b16 %v114, %v113
  %v127 = vpack.c.b16 %v116, %v115
  %v128 = vpack.c.b16 %v118, %v117
  %v129 = vpack.c.b16 %v120, %v119
  %v130 = vpack.c.b16 %v122, %v121
  %139 = vmatprep.subr.bf16.mxu0 0
  %140 = vmatpush1.bf16.msra.mxu0 %v123
  %141 = vmatprep.subr.bf16.mxu0 0
  %142 = vmatpush1.bf16.msra.mxu0 %v124
  %143 = vmatprep.subr.bf16.mxu0 0
  %144 = vmatpush1.bf16.msra.mxu0 %v125
  %145 = vmatprep.subr.bf16.mxu0 0
  %146 = vmatpush1.bf16.msra.mxu0 %v126
  %147 = vmatprep.subr.bf16.mxu0 0
  %148 = vmatpush1.bf16.msra.mxu0 %v127
  %149 = vmatprep.subr.bf16.mxu0 0
  %150 = vmatpush1.bf16.msra.mxu0 %v128
  %151 = vmatprep.subr.bf16.mxu0 0
  %152 = vmatpush1.bf16.msra.mxu0 %v129
  %153 = vmatprep.subr.bf16.mxu0 0
  %154 = vmatpush1.bf16.msra.mxu0 %v130
  %155 = vmatprep.subr.bf16.mxu0 0
  %156 = vmatpush1.bf16.msra.mxu0 0
  %157 = vmatprep.subr.bf16.mxu0 0
  %158 = vmatpush1.bf16.msra.mxu0 0
  %159 = vmatprep.subr.bf16.mxu0 0
  %160 = vmatpush1.bf16.msra.mxu0 0
  %161 = vmatprep.subr.bf16.mxu0 0
  %162 = vmatpush1.bf16.msra.mxu0 0
  %163 = vmatprep.subr.bf16.mxu0 0
  %164 = vmatpush1.bf16.msra.mxu0 0
  %165 = vmatprep.subr.bf16.mxu0 0
  %166 = vmatpush1.bf16.msra.mxu0 0
  %167 = vmatprep.subr.bf16.mxu0 0
  %168 = vmatpush1.bf16.msra.mxu0 0
  %169 = vmatprep.subr.bf16.mxu0 0
  %170 = vmatpush1.bf16.msra.mxu0 0
  %171 = vmatprep.mubr.bf16.mxu0 0
  %172 = vmatmul.mubr.bf16.gmra.mrb[0].mxu0 %v81
  %v173 = vpop.f32.mrb[0].mxu0
  %v174 = vadd.f32 0.0, %v173
  %v175 = vpop.f32.mrb[0].mxu0
  %v176 = vpop.f32.mrb[0].mxu0
  %v177 = vadd.f32 0.0, %v176
  %v178 = vpop.f32.mrb[0].mxu0
  %179 = vmatprep.mubr.bf16.mxu0 0
  %180 = vmatmul.mubr.bf16.gmra.mrb[0].mxu0 %v82
  %v181 = vpop.f32.mrb[0].mxu0
  %v182 = vadd.f32 0.0, %v181
  %v183 = vpop.f32.mrb[0].mxu0
  %v184 = vpop.f32.mrb[0].mxu0
  %v185 = vadd.f32 0.0, %v184
  %v186 = vpop.f32.mrb[0].mxu0
  %187 = vmatprep.mubr.bf16.mxu0 0
  %188 = vmatmul.mubr.bf16.gmra.mrb[0].mxu0 %v83
  %v189 = vpop.f32.mrb[0].mxu0
  %v190 = vadd.f32 0.0, %v189
  %v191 = vpop.f32.mrb[0].mxu0
  %v192 = vpop.f32.mrb[0].mxu0
  %v193 = vadd.f32 0.0, %v192
  %v194 = vpop.f32.mrb[0].mxu0
  %195 = vmatprep.mubr.bf16.mxu0 0
  %196 = vmatmul.mubr.bf16.gmra.mrb[0].mxu0 %v84
  %v197 = vpop.f32.mrb[0].mxu0
  %v198 = vadd.f32 0.0, %v197
  %v199 = vpop.f32.mrb[0].mxu0
  %v200 = vpop.f32.mrb[0].mxu0
  %v201 = vadd.f32 0.0, %v200
  %v202 = vpop.f32.mrb[0].mxu0
  %203 = vmatprep.mubr.bf16.mxu0 0
  %204 = vmatmul.mubr.bf16.gmra.mrb[0].mxu0 %v85
  %v205 = vpop.f32.mrb[0].mxu0
  %v206 = vadd.f32 0.0, %v205
  %v207 = vpop.f32.mrb[0].mxu0
  %v208 = vpop.f32.mrb[0].mxu0
  %v209 = vpop.f32.mrb[0].mxu0
  %210 = vdwg.mxu0
  %v211 = vadd.f32 %v29, %v174
  %v212 = vadd.f32 %v30, %v177
  %v213 = vadd.f32 %v31, %v182
  %v214 = vadd.f32 %v32, %v185
  %v215 = vadd.f32 %v33, %v190
  %v216 = vadd.f32 %v34, %v193
  %v217 = vadd.f32 %v35, %v198
  %v218 = vadd.f32 %v36, %v201
  %v219 = vadd.f32 %v37, %v206
  %vm220 = vcmask 97280
  %221 = vst.msk [vmem:[#allocation2] sm:$0xff] %vm220, %v211
  %222 = vst.msk [vmem:[#allocation2 + $0x8] sm:$0xff] %vm220, %v212
  %223 = vst.msk [vmem:[#allocation2 + $0x10] sm:$0xff] %vm220, %v213
  %224 = vst.msk [vmem:[#allocation2 + $0x18] sm:$0xff] %vm220, %v214
  %225 = vst.msk [vmem:[#allocation2 + $0x20] sm:$0xff] %vm220, %v215
  %226 = vst.msk [vmem:[#allocation2 + $0x28] sm:$0xff] %vm220, %v216
  %227 = vst.msk [vmem:[#allocation2 + $0x30] sm:$0xff] %vm220, %v217
  %228 = vst.msk [vmem:[#allocation2 + $0x38] sm:$0xff] %vm220, %v218
  %229 = vst.msk [vmem:[#allocation2 + $0x40] sm:$0xff] %vm220, %v219
  // Predicated region
  $region18: #{tpu_custom_call.1} parent=0 // pred_check
    %p230 = pneg %p15
  $region19: #{tpu_custom_call.1} parent=0 // pred_check_branch
    %232 = sbr.rel (%p230) target = $region21
  $region20: #{tpu_custom_call.1} parent=0 // pred_region
    %v233 = vld [vmem:[#allocation2] sm:$0xff]
    %v234 = vld [vmem:[#allocation2 + $0x8] sm:$0xff]
    %v235 = vld [vmem:[#allocation2 + $0x10] sm:$0xff]
    %v236 = vld [vmem:[#allocation2 + $0x18] sm:$0xff]
    %v237 = vld [vmem:[#allocation2 + $0x20] sm:$0xff]
    %v238 = vld [vmem:[#allocation2 + $0x28] sm:$0xff]
    %v239 = vld [vmem:[#allocation2 + $0x30] sm:$0xff]
    %v240 = vld [vmem:[#allocation2 + $0x38] sm:$0xff]
    %v241 = vld [vmem:[#allocation2 + $0x40] sm:$0xff]
    %vm242 = vcmp.gt.f32.partialorder %v233, 0.0
    %vm243 = vcmp.gt.f32.partialorder %v234, 0.0
    %vm244 = vcmp.gt.f32.partialorder %v235, 0.0
    %vm245 = vcmp.gt.f32.partialorder %v236, 0.0
    %vm246 = vcmp.gt.f32.partialorder %v237, 0.0
    %vm247 = vcmp.gt.f32.partialorder %v238, 0.0
    %vm248 = vcmp.gt.f32.partialorder %v239, 0.0
    %vm249 = vcmp.gt.f32.partialorder %v240, 0.0
    %vm250 = vcmp.gt.f32.partialorder %v241, 0.0
    %v251 = vsel %vm242, 1, 0
    %v252 = vsel %vm243, 1, 0
    %v253 = vsel %vm244, 1, 0
    %v254 = vsel %vm245, 1, 0
    %v255 = vsel %vm246, 1, 0
    %v256 = vsel %vm247, 1, 0
    %v257 = vsel %vm248, 1, 0
    %v258 = vsel %vm249, 1, 0
    %v259 = vsel %vm250, 1, 0
    %v260 = vcvt.s32.f32 %v251
    %v261 = vcvt.s32.f32 %v252
    %v262 = vcvt.s32.f32 %v253
    %v263 = vcvt.s32.f32 %v254
    %v264 = vcvt.s32.f32 %v255
    %v265 = vcvt.s32.f32 %v256
    %v266 = vcvt.s32.f32 %v257
    %v267 = vcvt.s32.f32 %v258
    %v268 = vcvt.s32.f32 %v259
    %v269 = vld [vmem:[%s2] sm:$0xff]
    %v270 = vld [vmem:[%s2 + $0x8] sm:$0xf]
    %v272 = vsel %vm220, %v260, 0
    %v275 = vsel %vm220, %v261, 0
    %v278 = vsel %vm220, %v262, 0
    %v281 = vsel %vm220, %v263, 0
    %v284 = vsel %vm220, %v264, 0
    %v287 = vsel %vm220, %v265, 0
    %v290 = vsel %vm220, %v266, 0
    %v293 = vsel %vm220, %v267, 0
    %v296 = vsel %vm220, %v268, 0
    %vm298 = vcmask 1043456
    %v300 = vsel %vm298, %v270, 0
    %302 = vmatprep.subr.mxu0 0.0
    %303 = vmatpush1.msra.mxu0 %v269
    %304 = vmatprep.subr.mxu0 0.0
    %305 = vmatpush1.msra.mxu0 %v300
    %306 = vmatprep.subr.mxu0 0.0
    %307 = vmatpush1.msra.mxu0 0.0
    %308 = vmatprep.subr.mxu0 0.0
    %309 = vmatpush1.msra.mxu0 0.0
    %310 = vmatprep.subr.mxu0 0.0
    %311 = vmatpush1.msra.mxu0 0.0
    %312 = vmatprep.subr.mxu0 0.0
    %313 = vmatpush1.msra.mxu0 0.0
    %314 = vmatprep.subr.mxu0 0.0
    %315 = vmatpush1.msra.mxu0 0.0
    %316 = vmatprep.subr.mxu0 0.0
    %317 = vmatpush1.msra.mxu0 0.0
    %318 = vmatprep.subr.mxu0 0.0
    %319 = vmatpush1.msra.mxu0 0.0
    %320 = vmatprep.subr.mxu0 0.0
    %321 = vmatpush1.msra.mxu0 0.0
    %322 = vmatprep.subr.mxu0 0.0
    %323 = vmatpush1.msra.mxu0 0.0
    %324 = vmatprep.subr.mxu0 0.0
    %325 = vmatpush1.msra.mxu0 0.0
    %326 = vmatprep.subr.mxu0 0.0
    %327 = vmatpush1.msra.mxu0 0.0
    %328 = vmatprep.subr.mxu0 0.0
    %329 = vmatpush1.msra.mxu0 0.0
    %330 = vmatprep.subr.mxu0 0.0
    %331 = vmatpush1.msra.mxu0 0.0
    %332 = vmatprep.subr.mxu0 0.0
    %333 = vmatpush1.msra.mxu0 0.0
    %334 = vmatprep.subr.mxu0 0.0
    %335 = vmatpush1.msra.mxu0 0.0
    %336 = vmatprep.subr.mxu0 0.0
    %337 = vmatpush1.msra.mxu0 0.0
    %338 = vmatprep.subr.mxu0 0.0
    %339 = vmatpush1.msra.mxu0 0.0
    %340 = vmatprep.subr.mxu0 0.0
    %341 = vmatpush1.msra.mxu0 0.0
    %342 = vmatprep.subr.mxu0 0.0
    %343 = vmatpush1.msra.mxu0 0.0
    %344 = vmatprep.subr.mxu0 0.0
    %345 = vmatpush1.msra.mxu0 0.0
    %346 = vmatprep.subr.mxu0 0.0
    %347 = vmatpush1.msra.mxu0 0.0
    %348 = vmatprep.subr.mxu0 0.0
    %349 = vmatpush1.msra.mxu0 0.0
    %350 = vmatprep.subr.mxu0 0.0
    %351 = vmatpush1.msra.mxu0 0.0
    %352 = vmatprep.subr.mxu0 0.0
    %353 = vmatpush1.msra.mxu0 0.0
    %354 = vmatprep.subr.mxu0 0.0
    %355 = vmatpush1.msra.mxu0 0.0
    %356 = vmatprep.subr.mxu0 0.0
    %357 = vmatpush1.msra.mxu0 0.0
    %358 = vmatprep.subr.mxu0 0.0
    %359 = vmatpush1.msra.mxu0 0.0
    %360 = vmatprep.subr.mxu0 0.0
    %361 = vmatpush1.msra.mxu0 0.0
    %362 = vmatprep.subr.mxu0 0.0
    %363 = vmatpush1.msra.mxu0 0.0
    %364 = vmatprep.subr.mxu0 0.0
    %365 = vmatpush1.msra.mxu0 0.0
    %366 = vmatprep.mubr.f32.mxu0 0.0
    %367 = vmatmul.mubr.f32.gmra.mrb[0].mxu0 %v272
    %v368 = vpop.f32.mrb[0].mxu0
    %v369 = vadd.f32 0.0, %v368
    %v370 = vpop.f32.mrb[0].mxu0
    %371 = vmatprep.mubr.f32.mxu0 0.0
    %372 = vmatmul.mubr.f32.gmra.mrb[0].mxu0 %v275
    %v373 = vpop.f32.mrb[0].mxu0
    %v374 = vadd.f32 0.0, %v373
    %v375 = vpop.f32.mrb[0].mxu0
    %376 = vmatprep.mubr.f32.mxu0 0.0
    %377 = vmatmul.mubr.f32.gmra.mrb[0].mxu0 %v278
    %v378 = vpop.f32.mrb[0].mxu0
    %v379 = vadd.f32 0.0, %v378
    %v380 = vpop.f32.mrb[0].mxu0
    %381 = vmatprep.mubr.f32.mxu0 0.0
    %382 = vmatmul.mubr.f32.gmra.mrb[0].mxu0 %v281
    %v383 = vpop.f32.mrb[0].mxu0
    %v384 = vadd.f32 0.0, %v383
    %v385 = vpop.f32.mrb[0].mxu0
    %386 = vmatprep.mubr.f32.mxu0 0.0
    %387 = vmatmul.mubr.f32.gmra.mrb[0].mxu0 %v284
    %v388 = vpop.f32.mrb[0].mxu0
    %v389 = vadd.f32 0.0, %v388
    %v390 = vpop.f32.mrb[0].mxu0
    %391 = vmatprep.mubr.f32.mxu0 0.0
    %392 = vmatmul.mubr.f32.gmra.mrb[0].mxu0 %v287
    %v393 = vpop.f32.mrb[0].mxu0
    %v394 = vadd.f32 0.0, %v393
    %v395 = vpop.f32.mrb[0].mxu0
    %396 = vmatprep.mubr.f32.mxu0 0.0
    %397 = vmatmul.mubr.f32.gmra.mrb[0].mxu0 %v290
    %v398 = vpop.f32.mrb[0].mxu0
    %v399 = vadd.f32 0.0, %v398
    %v400 = vpop.f32.mrb[0].mxu0
    %401 = vmatprep.mubr.f32.mxu0 0.0
    %402 = vmatmul.mubr.f32.gmra.mrb[0].mxu0 %v293
    %v403 = vpop.f32.mrb[0].mxu0
    %v404 = vadd.f32 0.0, %v403
    %v405 = vpop.f32.mrb[0].mxu0
    %406 = vmatprep.mubr.f32.mxu0 0.0
    %407 = vmatmul.mubr.f32.gmra.mrb[0].mxu0 %v296
    %v408 = vpop.f32.mrb[0].mxu0
    %v409 = vadd.f32 0.0, %v408
    %v410 = vpop.f32.mrb[0].mxu0
    %411 = vdwg.mxu0
    %v412 = vcvt.f32.s32.to.zero.pseudo %v369
    %v413 = vcvt.f32.s32.to.zero.pseudo %v374
    %v414 = vcvt.f32.s32.to.zero.pseudo %v379
    %v415 = vcvt.f32.s32.to.zero.pseudo %v384
    %v416 = vcvt.f32.s32.to.zero.pseudo %v389
    %v417 = vcvt.f32.s32.to.zero.pseudo %v394
    %v418 = vcvt.f32.s32.to.zero.pseudo %v399
    %v419 = vcvt.f32.s32.to.zero.pseudo %v404
    %v420 = vcvt.f32.s32.to.zero.pseudo %v409
    %vm421 = vcmask 23552
    %422 = vst.msk [vmem:[%s3] sm:$0xff] %vm421, %v412
    %423 = vst.msk [vmem:[%s3 + $0x8] sm:$0xff] %vm421, %v413
    %424 = vst.msk [vmem:[%s3 + $0x10] sm:$0xff] %vm421, %v414
    %425 = vst.msk [vmem:[%s3 + $0x18] sm:$0xff] %vm421, %v415
    %426 = vst.msk [vmem:[%s3 + $0x20] sm:$0xff] %vm421, %v416
    %427 = vst.msk [vmem:[%s3 + $0x28] sm:$0xff] %vm421, %v417
    %428 = vst.msk [vmem:[%s3 + $0x30] sm:$0xff] %vm421, %v418
    %429 = vst.msk [vmem:[%s3 + $0x38] sm:$0xff] %vm421, %v419
    %430 = vst.msk [vmem:[%s3 + $0x40] sm:$0xff] %vm421, %v420
  $region21: #{tpu_custom_call.1} parent=0 // pred_fallthru
    _
  // Predicated region
  $region22: #{tpu_custom_call.1} parent=0 // pred_check
    _
  $region23: #{tpu_custom_call.1} parent=0 // pred_check_branch
    %432 = sbr.rel (0) target = $region25
  $region24: #{tpu_custom_call.1} parent=0 // pred_region
    _
  $region25: #{tpu_custom_call.1} parent=0 // pred_fallthru
    _
  // Predicated region
  $region26: #{tpu_custom_call.1} parent=0 // pred_check
    _
  $region27: #{tpu_custom_call.1} parent=0 // pred_check_branch
    %434 = sbr.rel (0) target = $region29
  $region28: #{tpu_custom_call.1} parent=0 // pred_region
    _
  $region29: #{tpu_custom_call.1} parent=0 // pred_fallthru
    _

</llo_original>
